<compile_context>
chip_gen: v7x
topology: tpu7x:2x2x1
jax: 0.10.0
libtpu: 0.0.40
codegen_flags: <defaults>
</compile_context>

<pallas_src>
import functools

import jax
import jax.numpy as jnp
from jax.experimental import pallas as pl
from jax.experimental.pallas import tpu as pltpu


def _f1_partial_sums_kernel(pred_ref, label_ref,
                            tp_out, sp_out, cnt_out,
                            tp_acc, sp_acc, cnt_acc,
                            *, n_rows: int):
    i = pl.program_id(1)                      # tile index within this part

    @pl.when(i == 0)
    def _init():
        tp_acc[...] = jnp.zeros_like(tp_acc)
        sp_acc[...] = jnp.zeros_like(sp_acc)
        cnt_acc[...] = jnp.zeros_like(cnt_acc)

    pred = pred_ref[...].astype(jnp.float32)  # (BN, C) logits, f32 in-register
    labels = label_ref[...]                   # (BN, 1) int32 class ids
    bn, c = pred.shape

    # Global row index of each tile row -> validity mask. Kills the ragged
    # tail of the batch (rows >= n_rows contribute exactly zero).
    tile_idx = pl.program_id(0) * pl.num_programs(1) + i
    row_iota = jax.lax.broadcasted_iota(jnp.int32, (bn, c), 0)
    valid = (tile_idx * bn + row_iota) < n_rows          # (BN, C) bool

    # Row-wise softmax over the class (lane) axis.
    m = jnp.max(pred, axis=1, keepdims=True)
    e = jnp.exp(pred - m)
    p = e / jnp.sum(e, axis=1, keepdims=True)            # (BN, C)
    p = jnp.where(valid, p, 0.0)

    # Fused one-hot: hit[r, k] <=> labels[r] == k and row r is valid.
    class_iota = jax.lax.broadcasted_iota(jnp.int32, (bn, c), 1)
    hit = (class_iota == labels) & valid                 # (BN, C) bool

    # Per-class partial sums for this tile (accumulators are one vreg each).
    tp_acc[...] += jnp.sum(jnp.where(hit, p, 0.0), axis=0, keepdims=True)
    sp_acc[...] += jnp.sum(p, axis=0, keepdims=True)
    cnt_acc[...] += jnp.sum(hit.astype(jnp.float32), axis=0, keepdims=True)

    @pl.when(i == pl.num_programs(1) - 1)
    def _finalize():
        # All 8 sublanes of each accumulator hold identical values (the (1, C)
        # tile sums broadcast over sublanes); emit this part's partials.
        tp_out[...] = tp_acc[...][None, :, :]
        sp_out[...] = sp_acc[...][None, :, :]
        cnt_out[...] = cnt_acc[...][None, :, :]


def f1_loss(y_pred, y_true, classes: int = 30, epsilon: float = 1e-7,
            block_rows: int = 1024, num_parts: int = 2):
    """Pallas implementation of F1Loss.forward(y_pred, y_true)."""
    assert y_pred.ndim == 2
    assert y_true.ndim == 1
    n, c = y_pred.shape
    assert c == classes

    labels_2d = y_true.astype(jnp.int32).reshape(n, 1)

    # Batch tile: multiple of 8 sublanes, or the whole batch if it fits in one
    # tile. Bounded VMEM regardless of N (fits v7x's smaller VMEM easily).
    block_rows = max(8, (block_rows // 8) * 8)
    bn = n if n <= block_rows else block_rows
    total_tiles = pl.cdiv(n, bn)

    # Outer "parallel" axis: split the tiles across TensorCores (2 on v7x).
    # Only used when it divides evenly so the index maps stay purely affine.
    p_parts = num_parts if (num_parts > 1 and total_tiles % num_parts == 0) else 1
    tpp = total_tiles // p_parts

    kernel = functools.partial(_f1_partial_sums_kernel, n_rows=n)

    part_sum_shape = jax.ShapeDtypeStruct((p_parts, 8, c), jnp.float32)
    in_map = lambda s, i: (s * tpp + i, 0)
    out_map = lambda s, i: (s, 0, 0)

    tp_p, sp_p, cnt_p = pl.pallas_call(
        kernel,
        out_shape=(part_sum_shape, part_sum_shape, part_sum_shape),
        grid_spec=pltpu.PrefetchScalarGridSpec(
            num_scalar_prefetch=0,
            grid=(p_parts, tpp),
            in_specs=[
                pl.BlockSpec((bn, c), in_map),   # logits tile (native dtype)
                pl.BlockSpec((bn, 1), in_map),   # labels tile (int32)
            ],
            out_specs=(
                pl.BlockSpec((1, 8, c), out_map),
                pl.BlockSpec((1, 8, c), out_map),
                pl.BlockSpec((1, 8, c), out_map),
            ),
            scratch_shapes=[pltpu.VMEM((8, c), jnp.float32)] * 3,
        ),
        compiler_params=pltpu.CompilerParams(
            dimension_semantics=("parallel", "arbitrary"),
            vmem_limit_bytes=32 * 1024 * 1024,
        ),
    )(y_pred, labels_2d)

    # Tiny epilogue in plain JAX: reduce per-part partials, derive fp/fn, F1.
    tp = jnp.sum(tp_p[:, 0, :], axis=0)
    sp = jnp.sum(sp_p[:, 0, :], axis=0)
    cnt = jnp.sum(cnt_p[:, 0, :], axis=0)
    fp = sp - tp
    fn = cnt - tp
    # tn is computed in the PyTorch module but never used; skipped.
    precision = tp / (tp + fp + epsilon)
    recall = tp / (tp + fn + epsilon)
    f1 = 2.0 * (precision * recall) / (precision + recall + epsilon)
    f1 = jnp.clip(f1, epsilon, 1.0 - epsilon)
    return 1.0 - jnp.mean(f1)


def _f1_loss_ref(y_pred, y_true, classes=30, epsilon=1e-7):
    # Pure-JAX reference mirroring the PyTorch module.
    y = jax.nn.one_hot(y_true, classes, dtype=jnp.float32)
    p = jax.nn.softmax(y_pred.astype(jnp.float32), axis=1)
    tp = jnp.sum(y * p, axis=0)
    fp = jnp.sum((1.0 - y) * p, axis=0)
    fn = jnp.sum(y * (1.0 - p), axis=0)
    precision = tp / (tp + fp + epsilon)
    recall = tp / (tp + fn + epsilon)
    f1 = 2.0 * (precision * recall) / (precision + recall + epsilon)
    f1 = jnp.clip(f1, epsilon, 1.0 - epsilon)
    return 1.0 - jnp.mean(f1)


if __name__ == "__main__":
    CLASSES = 30

    key = jax.random.PRNGKey(0)
    k1, k2, k3, k4 = jax.random.split(key, 4)

    # Primary small check (single tile, whole batch in one block).
    n1 = 8
    y_pred1 = jax.random.normal(k1, (n1, CLASSES), dtype=jnp.float32)
    y_true1 = jax.random.randint(k2, (n1,), 0, CLASSES, dtype=jnp.int32)
    loss1 = f1_loss(y_pred1, y_true1, classes=CLASSES)
    jax.block_until_ready(loss1)
    ref1 = _f1_loss_ref(y_pred1, y_true1, classes=CLASSES)
    assert jnp.allclose(loss1, ref1, atol=1e-5, rtol=1e-5), (loss1, ref1)

    # Multi-tile check: exercises the tiled accumulator path, the ragged
    # last-tile mask, and the 2-part "parallel" split (8 tiles of 8 rows).
    n2 = 61
    y_pred2 = jax.random.normal(k3, (n2, CLASSES), dtype=jnp.float32)
    y_true2 = jax.random.randint(k4, (n2,), 0, CLASSES, dtype=jnp.int32)
    loss2 = f1_loss(y_pred2, y_true2, classes=CLASSES, block_rows=8, num_parts=2)
    jax.block_until_ready(loss2)
    ref2 = _f1_loss_ref(y_pred2, y_true2, classes=CLASSES)
    assert jnp.allclose(loss2, ref2, atol=1e-5, rtol=1e-5), (loss2, ref2)

    print("KERNEL_OK")
</pallas_src>

<mosaic_0001>
module attributes {stable_mosaic.version = 11 : i64} {
  func.func @_f1_partial_sums_kernel(%arg0: i32, %arg1: i32, %arg2: memref<8x30xf32, #tpu.memory_space<vmem>>, %arg3: memref<8x1xi32, #tpu.memory_space<vmem>>, %arg4: memref<1x8x30xf32, #tpu.memory_space<vmem>>, %arg5: memref<1x8x30xf32, #tpu.memory_space<vmem>>, %arg6: memref<1x8x30xf32, #tpu.memory_space<vmem>>, %arg7: memref<8x30xf32, #tpu.memory_space<vmem>>, %arg8: memref<8x30xf32, #tpu.memory_space<vmem>>, %arg9: memref<8x30xf32, #tpu.memory_space<vmem>>) attributes {dimension_semantics = [#tpu.dimension_semantics<parallel>, #tpu.dimension_semantics<arbitrary>], iteration_bounds = array<i64: 1, 1>, scalar_prefetch = 0 : i64, scratch_operands = 3 : i64, tpu.core_type = #tpu.core_type<tc>, window_params = [{transform_indices = @transform_0, window_bounds = array<i64: 8, 30>}, {transform_indices = @transform_1, window_bounds = array<i64: 8, 1>}, {transform_indices = @transform_2, window_bounds = array<i64: 1, 8, 30>}, {transform_indices = @transform_3, window_bounds = array<i64: 1, 8, 30>}, {transform_indices = @transform_4, window_bounds = array<i64: 1, 8, 30>}]} {
    %c0_i32 = arith.constant 0 : i32
    %0 = arith.cmpi eq, %arg1, %c0_i32 : i32
    %1 = arith.extui %0 : i1 to i32
    %c0_i32_0 = arith.constant 0 : i32
    %2 = arith.cmpi ne, %1, %c0_i32_0 : i32
    scf.if %2 {
      %cst_25 = arith.constant 0.000000e+00 : f32
      %53 = vector.broadcast %cst_25 : f32 to vector<8x30xf32>
      %c0_26 = arith.constant 0 : index
      %c0_27 = arith.constant 0 : index
      %54 = vector.load %arg7[%c0_26, %c0_27] : memref<8x30xf32, #tpu.memory_space<vmem>>, vector<8x30xf32>
      tpu.vector_store %arg7[%c0_26, %c0_27], %53 {strides = array<i32>} : memref<8x30xf32, #tpu.memory_space<vmem>>, vector<8x30xf32>,
      %cst_28 = arith.constant 0.000000e+00 : f32
      %55 = vector.broadcast %cst_28 : f32 to vector<8x30xf32>
      %c0_29 = arith.constant 0 : index
      %c0_30 = arith.constant 0 : index
      %56 = vector.load %arg8[%c0_29, %c0_30] : memref<8x30xf32, #tpu.memory_space<vmem>>, vector<8x30xf32>
      tpu.vector_store %arg8[%c0_29, %c0_30], %55 {strides = array<i32>} : memref<8x30xf32, #tpu.memory_space<vmem>>, vector<8x30xf32>,
      %cst_31 = arith.constant 0.000000e+00 : f32
      %57 = vector.broadcast %cst_31 : f32 to vector<8x30xf32>
      %c0_32 = arith.constant 0 : index
      %c0_33 = arith.constant 0 : index
      %58 = vector.load %arg9[%c0_32, %c0_33] : memref<8x30xf32, #tpu.memory_space<vmem>>, vector<8x30xf32>
      tpu.vector_store %arg9[%c0_32, %c0_33], %57 {strides = array<i32>} : memref<8x30xf32, #tpu.memory_space<vmem>>, vector<8x30xf32>,
    } else {
    }
    %c0 = arith.constant 0 : index
    %c0_1 = arith.constant 0 : index
    %3 = vector.load %arg2[%c0, %c0_1] : memref<8x30xf32, #tpu.memory_space<vmem>>, vector<8x30xf32>
    %c0_2 = arith.constant 0 : index
    %c0_3 = arith.constant 0 : index
    %4 = vector.load %arg3[%c0_2, %c0_3] : memref<8x1xi32, #tpu.memory_space<vmem>>, vector<8x1xi32>
    %c1_i32 = arith.constant 1 : i32
    %5 = arith.muli %arg0, %c1_i32 : i32
    %6 = arith.addi %5, %arg1 : i32
    %7 = tpu.iota {dimensions = array<i32: 0>} : vector<8x30xi32>
    %c8_i32 = arith.constant 8 : i32
    %8 = arith.muli %6, %c8_i32 : i32
    %9 = vector.broadcast %8 : i32 to vector<8x30xi32>
    %10 = arith.addi %9, %7 : vector<8x30xi32>
    %c8_i32_4 = arith.constant 8 : i32
    %11 = vector.broadcast %c8_i32_4 : i32 to vector<8x30xi32>
    %12 = arith.cmpi slt, %10, %11 : vector<8x30xi32>
    %cst = arith.constant dense<0xFF800000> : vector<8xf32>
    %13 = vector.multi_reduction <maximumf>, %3, %cst [1] : vector<8x30xf32> to vector<8xf32>
    %14 = vector.shape_cast %13 : vector<8xf32> to vector<8x1xf32>
    %15 = vector.broadcast %14 : vector<8x1xf32> to vector<8x30xf32>
    %16 = arith.subf %3, %15 : vector<8x30xf32>
    %17 = math.exp %16 : vector<8x30xf32>
    %cst_5 = arith.constant dense<0.000000e+00> : vector<8xf32>
    %18 = vector.multi_reduction <add>, %17, %cst_5 [1] : vector<8x30xf32> to vector<8xf32>
    %19 = vector.shape_cast %18 : vector<8xf32> to vector<8x1xf32>
    %20 = vector.broadcast %19 : vector<8x1xf32> to vector<8x30xf32>
    %21 = arith.divf %17, %20 : vector<8x30xf32>
    %cst_6 = arith.constant 0.000000e+00 : f32
    %22 = vector.broadcast %cst_6 : f32 to vector<8x30xf32>
    %23 = arith.select %12, %21, %22 : vector<8x30xi1>, vector<8x30xf32>
    %24 = tpu.iota {dimensions = array<i32: 1>} : vector<8x30xi32>
    %25 = vector.broadcast %4 : vector<8x1xi32> to vector<8x30xi32>
    %26 = arith.cmpi eq, %24, %25 : vector<8x30xi32>
    %27 = arith.andi %26, %12 : vector<8x30xi1>
    %c0_7 = arith.constant 0 : index
    %c0_8 = arith.constant 0 : index
    %28 = vector.load %arg7[%c0_7, %c0_8] : memref<8x30xf32, #tpu.memory_space<vmem>>, vector<8x30xf32>
    %cst_9 = arith.constant 0.000000e+00 : f32
    %29 = vector.broadcast %cst_9 : f32 to vector<8x30xf32>
    %30 = arith.select %27, %23, %29 : vector<8x30xi1>, vector<8x30xf32>
    %cst_10 = arith.constant dense<0.000000e+00> : vector<30xf32>
    %31 = vector.multi_reduction <add>, %30, %cst_10 [0] : vector<8x30xf32> to vector<30xf32>
    %32 = vector.shape_cast %31 : vector<30xf32> to vector<1x30xf32>
    %33 = vector.broadcast %32 : vector<1x30xf32> to vector<8x30xf32>
    %34 = arith.addf %28, %33 : vector<8x30xf32>
    %c0_11 = arith.constant 0 : index
    %c0_12 = arith.constant 0 : index
    %35 = vector.load %arg7[%c0_11, %c0_12] : memref<8x30xf32, #tpu.memory_space<vmem>>, vector<8x30xf32>
    tpu.vector_store %arg7[%c0_11, %c0_12], %34 {strides = array<i32>} : memref<8x30xf32, #tpu.memory_space<vmem>>, vector<8x30xf32>,
    %c0_13 = arith.constant 0 : index
    %c0_14 = arith.constant 0 : index
    %36 = vector.load %arg8[%c0_13, %c0_14] : memref<8x30xf32, #tpu.memory_space<vmem>>, vector<8x30xf32>
    %cst_15 = arith.constant dense<0.000000e+00> : vector<30xf32>
    %37 = vector.multi_reduction <add>, %23, %cst_15 [0] : vector<8x30xf32> to vector<30xf32>
    %38 = vector.shape_cast %37 : vector<30xf32> to vector<1x30xf32>
    %39 = vector.broadcast %38 : vector<1x30xf32> to vector<8x30xf32>
    %40 = arith.addf %36, %39 : vector<8x30xf32>
    %c0_16 = arith.constant 0 : index
    %c0_17 = arith.constant 0 : index
    %41 = vector.load %arg8[%c0_16, %c0_17] : memref<8x30xf32, #tpu.memory_space<vmem>>, vector<8x30xf32>
    tpu.vector_store %arg8[%c0_16, %c0_17], %40 {strides = array<i32>} : memref<8x30xf32, #tpu.memory_space<vmem>>, vector<8x30xf32>,
    %c0_18 = arith.constant 0 : index
    %c0_19 = arith.constant 0 : index
    %42 = vector.load %arg9[%c0_18, %c0_19] : memref<8x30xf32, #tpu.memory_space<vmem>>, vector<8x30xf32>
    %43 = arith.extui %27 : vector<8x30xi1> to vector<8x30xi32>
    %44 = arith.sitofp %43 : vector<8x30xi32> to vector<8x30xf32>
    %cst_20 = arith.constant dense<0.000000e+00> : vector<30xf32>
    %45 = vector.multi_reduction <add>, %44, %cst_20 [0] : vector<8x30xf32> to vector<30xf32>
    %46 = vector.shape_cast %45 : vector<30xf32> to vector<1x30xf32>
    %47 = vector.broadcast %46 : vector<1x30xf32> to vector<8x30xf32>
    %48 = arith.addf %42, %47 : vector<8x30xf32>
    %c0_21 = arith.constant 0 : index
    %c0_22 = arith.constant 0 : index
    %49 = vector.load %arg9[%c0_21, %c0_22] : memref<8x30xf32, #tpu.memory_space<vmem>>, vector<8x30xf32>
    tpu.vector_store %arg9[%c0_21, %c0_22], %48 {strides = array<i32>} : memref<8x30xf32, #tpu.memory_space<vmem>>, vector<8x30xf32>,
    %c0_i32_23 = arith.constant 0 : i32
    %50 = arith.cmpi eq, %arg1, %c0_i32_23 : i32
    %51 = arith.extui %50 : i1 to i32
    %c0_i32_24 = arith.constant 0 : i32
    %52 = arith.cmpi ne, %51, %c0_i32_24 : i32
    scf.if %52 {
      %c0_25 = arith.constant 0 : index
      %c0_26 = arith.constant 0 : index
      %53 = vector.load %arg7[%c0_25, %c0_26] : memref<8x30xf32, #tpu.memory_space<vmem>>, vector<8x30xf32>
      %54 = vector.shape_cast %53 : vector<8x30xf32> to vector<1x8x30xf32>
      %c0_27 = arith.constant 0 : index
      %c0_28 = arith.constant 0 : index
      %c0_29 = arith.constant 0 : index
      %55 = vector.load %arg4[%c0_27, %c0_28, %c0_29] : memref<1x8x30xf32, #tpu.memory_space<vmem>>, vector<1x8x30xf32>
      tpu.vector_store %arg4[%c0_27, %c0_28, %c0_29], %54 {strides = array<i32>} : memref<1x8x30xf32, #tpu.memory_space<vmem>>, vector<1x8x30xf32>,
      %c0_30 = arith.constant 0 : index
      %c0_31 = arith.constant 0 : index
      %56 = vector.load %arg8[%c0_30, %c0_31] : memref<8x30xf32, #tpu.memory_space<vmem>>, vector<8x30xf32>
      %57 = vector.shape_cast %56 : vector<8x30xf32> to vector<1x8x30xf32>
      %c0_32 = arith.constant 0 : index
      %c0_33 = arith.constant 0 : index
      %c0_34 = arith.constant 0 : index
      %58 = vector.load %arg5[%c0_32, %c0_33, %c0_34] : memref<1x8x30xf32, #tpu.memory_space<vmem>>, vector<1x8x30xf32>
      tpu.vector_store %arg5[%c0_32, %c0_33, %c0_34], %57 {strides = array<i32>} : memref<1x8x30xf32, #tpu.memory_space<vmem>>, vector<1x8x30xf32>,
      %c0_35 = arith.constant 0 : index
      %c0_36 = arith.constant 0 : index
      %59 = vector.load %arg9[%c0_35, %c0_36] : memref<8x30xf32, #tpu.memory_space<vmem>>, vector<8x30xf32>
      %60 = vector.shape_cast %59 : vector<8x30xf32> to vector<1x8x30xf32>
      %c0_37 = arith.constant 0 : index
      %c0_38 = arith.constant 0 : index
      %c0_39 = arith.constant 0 : index
      %61 = vector.load %arg6[%c0_37, %c0_38, %c0_39] : memref<1x8x30xf32, #tpu.memory_space<vmem>>, vector<1x8x30xf32>
      tpu.vector_store %arg6[%c0_37, %c0_38, %c0_39], %60 {strides = array<i32>} : memref<1x8x30xf32, #tpu.memory_space<vmem>>, vector<1x8x30xf32>,
    } else {
    }
    return
  }
  func.func @transform_0(%arg0: i32, %arg1: i32) -> (i32, i32) {
    %c1_i32 = arith.constant 1 : i32
    %0 = arith.muli %arg0, %c1_i32 : i32
    %1 = arith.addi %0, %arg1 : i32
    %c0_i32 = arith.constant 0 : i32
    %c0_i32_0 = arith.constant 0 : i32
    return %1, %c0_i32 : i32, i32
  }
  func.func @transform_1(%arg0: i32, %arg1: i32) -> (i32, i32) {
    %c1_i32 = arith.constant 1 : i32
    %0 = arith.muli %arg0, %c1_i32 : i32
    %1 = arith.addi %0, %arg1 : i32
    %c0_i32 = arith.constant 0 : i32
    %c0_i32_0 = arith.constant 0 : i32
    return %1, %c0_i32 : i32, i32
  }
  func.func @transform_2(%arg0: i32, %arg1: i32) -> (i32, i32, i32) {
    %c0_i32 = arith.constant 0 : i32
    %c0_i32_0 = arith.constant 0 : i32
    %c0_i32_1 = arith.constant 0 : i32
    return %arg0, %c0_i32, %c0_i32_0 : i32, i32, i32
  }
  func.func @transform_3(%arg0: i32, %arg1: i32) -> (i32, i32, i32) {
    %c0_i32 = arith.constant 0 : i32
    %c0_i32_0 = arith.constant 0 : i32
    %c0_i32_1 = arith.constant 0 : i32
    return %arg0, %c0_i32, %c0_i32_0 : i32, i32, i32
  }
  func.func @transform_4(%arg0: i32, %arg1: i32) -> (i32, i32, i32) {
    %c0_i32 = arith.constant 0 : i32
    %c0_i32_0 = arith.constant 0 : i32
    %c0_i32_1 = arith.constant 0 : i32
    return %arg0, %c0_i32, %c0_i32_0 : i32, i32, i32
  }
}

</mosaic_0001>

<llo_original>
// kernel: tpu_custom_call.1
$region0: #{tpu_custom_call.1}
  #allocation0 [shape = 'u32[]', space=smem, size = 0x4, offset = 0x4, fixed_abs, tag = 'smem constant byte address 0x4 - core index']
  #allocation1 [shape = 'u32[144,128]{1,0:T(1,128)}', space=vmem, size = 0x12000, scoped, tag = 'internal scratch']
  #allocation2 [shape = 'f32[8,30]{1,0:T(8,128)}', space=vmem, size = 0x1000, scoped, tag = 'scratch operand']
  #allocation3 [shape = 'f32[8,30]{1,0:T(8,128)}', space=vmem, size = 0x1000, scoped, tag = 'scratch operand']
  #allocation4 [shape = 'f32[8,30]{1,0:T(8,128)}', space=vmem, size = 0x1000, scoped, tag = 'scratch operand']
  %s0 = inlined_call_operand.vmem [shape: f32[8,30], index: 0, kind: input, shape index: {}]
  %s1 = inlined_call_operand.vmem [shape: s32[8,1], index: 1, kind: input, shape index: {}]
  %s2 = inlined_call_operand.hbm [shape: f32[1,8,30], index: 2, kind: output, shape index: {0}]
  %s3 = inlined_call_operand.hbm [shape: f32[1,8,30], index: 3, kind: output, shape index: {1}]
  %s4 = inlined_call_operand.hbm [shape: f32[1,8,30], index: 4, kind: output, shape index: {2}]
  %5 = xla_tuple %s2, %s3, %s4
  %s6 = sld [smem:[#allocation0]]
  $region42: #{tpu_custom_call.1} parent=0
    _
  %s8 = ssub.s32 1, %s6
  %s9 = scalar_select 0, %s8, %s6
  $region1: #{tpu_custom_call.1} parent=0
    #allocation5 [shape = 'u8[4096]{0}', space=vmem, size = 0x1000, scoped, tag = 'output window, operand 0, single buffered']
    #allocation6 [shape = 's32[1]{0}', space=sflag, size = 0x4, scoped, tag = 'scoped memory for tpu_custom_call.1']
    #allocation7 [shape = 'u8[4096]{0}', space=vmem, size = 0x1000, scoped, tag = 'output window, operand 1, single buffered']
    #allocation8 [shape = 's32[1]{0}', space=sflag, size = 0x4, scoped, tag = 'scoped memory for tpu_custom_call.1']
    #allocation9 [shape = 'u8[4096]{0}', space=vmem, size = 0x1000, scoped, tag = 'output window, operand 2, single buffered']
    %10 = vsyncpa [#allocation6], 0
    %11 = vsyncpa [#allocation8], 0
    // Predicated region
    $region2: #{tpu_custom_call.1} parent=1 // pred_check
      _
    $region3: #{tpu_custom_call.1} parent=1 // pred_check_branch
      %13 = sbr.rel (0) target = $region5
    $region4: #{tpu_custom_call.1} parent=1 // pred_region
      %s14 = sadd.s32 0, 0
      %p15 = scmp.lt.s32.totalorder %s14, 0
      %s16 = scalar_select %p15, %s14, 0
      %s17 = smul.addr %s16, 8
      %s18 = scalar_lea.vmem %s0, %s17
      %s19 = sadd.s32 0, 0
    $region5: #{tpu_custom_call.1} parent=1 // pred_fallthru
      _
    // Predicated region
    $region6: #{tpu_custom_call.1} parent=1 // pred_check
      _
    $region7: #{tpu_custom_call.1} parent=1 // pred_check_branch
      %21 = sbr.rel (0) target = $region9
    $region8: #{tpu_custom_call.1} parent=1 // pred_region
      %s22 = sadd.s32 0, 0
      %p23 = scmp.lt.s32.totalorder %s22, 0
      %s24 = scalar_select %p23, %s22, 0
      %s25 = smul.addr %s24, 8
      %s26 = scalar_lea.vmem %s1, %s25
      %s27 = sadd.s32 0, 0
    $region9: #{tpu_custom_call.1} parent=1 // pred_fallthru
      _
    %s28 = sadd.s32 0, 0
    %p29 = scmp.lt.s32.totalorder %s28, 0
    %s30 = scalar_select %p29, %s28, 0
    %s31 = smul.addr %s30, 8
    %s32 = scalar_lea.vmem %s0, %s31
    %s33 = sadd.s32 0, 0
    %p34 = scmp.lt.s32.totalorder %s33, 0
    %s35 = scalar_select %p34, %s33, 0
    %s36 = smul.addr %s35, 8
    %s37 = scalar_lea.vmem %s1, %s36
    %s38 = sadd.s32 0, 0
    %p39 = scmp.lt.s32.totalorder %s38, 0
    %s40 = scalar_select %p39, %s38, 0
    %s41 = smul.addr %s40, 8
    %s42 = scalar_lea.vmem %s0, %s41
    %s43 = sadd.s32 0, 0
    %s44 = sadd.s32 0, 0
    %p45 = scmp.lt.s32.totalorder %s44, 0
    %s46 = scalar_select %p45, %s44, 0
    %s47 = smul.addr %s46, 8
    %s48 = scalar_lea.vmem %s1, %s47
    %s49 = sadd.s32 0, 0
    %p50 = scmp.eq.s32.totalorder 0, 0
    // Predicated region
    $region10: #{tpu_custom_call.1} parent=1 // pred_check
      %p51 = pneg %p50
    $region11: #{tpu_custom_call.1} parent=1 // pred_check_branch
      %53 = sbr.rel (%p51) target = $region13
    $region12: #{tpu_custom_call.1} parent=1 // pred_region
      %vm54 = vcmask 244736
      %55 = vst.msk [vmem:[#allocation2] sm:$0xff] %vm54, 0.0
      %56 = vst.msk [vmem:[#allocation3] sm:$0xff] %vm54, 0.0
      %57 = vst.msk [vmem:[#allocation4] sm:$0xff] %vm54, 0.0
    $region13: #{tpu_custom_call.1} parent=1 // pred_fallthru
      _
    %v58 = vld [vmem:[%s42] sm:$0xff]
    %v59 = vld [vmem:[%s48] sm:$0xff]
    %s60 = sadd.s32 0, 0
    %v61 = vlaneseq
    %v62 = vshrl.u32 %v61, 7
    %s63 = smul.u32 %s60, 8
    %v64 = vstv %s63
    %v65 = vadd.s32 %v64, %v62
    %vm66 = vcmp.lt.s32.totalorder %v65, 8
    %vm67 = vcmask 244736
    %v68 = vsel %vm67, %v58, -inf
    %69 = vmax.xlane.f32.xlu0 %v68
    %v70 = vpop.xlane.xlu0 %69
    %v71 = vsub.f32 %v58, %v70
    %v72 = vmul.f32 %v71, 1.442695
    %v73 = vpow.pop %v72
    %v74 = vsel %vm67, %v73, 0.0
    %75 = vadd.xlane.f32.xlu0 %v74
    %v76 = vpop.xlane.xlu0 %75
    %v77 = vrcp.pop %v76
    %v78 = vmul.f32 %v73, %v77
    %v79 = vsel %vm66, %v78, 0.0
    %v80 = vlaneseq
    %v81 = vand.u32 %v80, 127
    %82 = vset.pattern.permute.xlu0 0
    %83 = vperm.xlu0 %82, %v59
    %v84 = vpop.permute.xlu0 %83
    %vm85 = vcmp.eq.s32.totalorder %v81, %v84
    %vm86 = vmand %vm85, %vm66
    %v87 = vld [vmem:[#allocation2] sm:$0xff]
    %v88 = vsel %vm86, %v79, 0.0
    %v89 = vsel %vm67, %v88, 0.0
    %v90 = vrot.slane %v89, 4
    %v91 = vadd.f32 %v89, %v90
    %v92 = vrot.slane %v91, 2
    %v93 = vadd.f32 %v91, %v92
    %v94 = vrot.slane %v93, 1
    %v95 = vadd.f32 %v93, %v94
    %v96 = vadd.f32 %v87, %v95
    %97 = vst.msk [vmem:[#allocation2] sm:$0xff] %vm67, %v96
    %v98 = vld [vmem:[#allocation3] sm:$0xff]
    %v99 = vsel %vm67, %v79, 0.0
    %v100 = vrot.slane %v99, 4
    %v101 = vadd.f32 %v99, %v100
    %v102 = vrot.slane %v101, 2
    %v103 = vadd.f32 %v101, %v102
    %v104 = vrot.slane %v103, 1
    %v105 = vadd.f32 %v103, %v104
    %v106 = vadd.f32 %v98, %v105
    %107 = vst.msk [vmem:[#allocation3] sm:$0xff] %vm67, %v106
    %v108 = vld [vmem:[#allocation4] sm:$0xff]
    %v109 = vsel %vm86, 1, 0
    %v110 = vcvt.s32.f32 %v109
    %v111 = vsel %vm67, %v110, 0.0
    %v112 = vrot.slane %v111, 4
    %v113 = vadd.f32 %v111, %v112
    %v114 = vrot.slane %v113, 2
    %v115 = vadd.f32 %v113, %v114
    %v116 = vrot.slane %v115, 1
    %v117 = vadd.f32 %v115, %v116
    %v118 = vadd.f32 %v108, %v117
    %119 = vst.msk [vmem:[#allocation4] sm:$0xff] %vm67, %v118
    // Predicated region
    $region14: #{tpu_custom_call.1} parent=1 // pred_check
      %p120 = pneg %p50
    $region15: #{tpu_custom_call.1} parent=1 // pred_check_branch
      %122 = sbr.rel (%p120) target = $region17
    $region16: #{tpu_custom_call.1} parent=1 // pred_region
      %v123 = vld [vmem:[#allocation2] sm:$0xff]
      %124 = vst.msk [vmem:[#allocation5] sm:$0xff] %vm67, %v123
      %v125 = vld [vmem:[#allocation3] sm:$0xff]
      %126 = vst.msk [vmem:[#allocation7] sm:$0xff] %vm67, %v125
      %v127 = vld [vmem:[#allocation4] sm:$0xff]
      %128 = vst.msk [vmem:[#allocation9] sm:$0xff] %vm67, %v127
    $region17: #{tpu_custom_call.1} parent=1 // pred_fallthru
      _
    // Predicated region
    $region18: #{tpu_custom_call.1} parent=1 // pred_check
      _
    $region19: #{tpu_custom_call.1} parent=1 // pred_check_branch
      %130 = sbr.rel (0) target = $region21
    $region20: #{tpu_custom_call.1} parent=1 // pred_region
      %s132 = ssub.s32 128, 128
      %133 = vsyncadd [#allocation6], %s132
      %s135 = sshll.u32 [#allocation5], 4
      %s136 = int_to_ptr.vmem [resolvable:$true] %s135
      %138 = dma.vmem_to_hbm [thread:$0]  %s136, 128, %s2, [#allocation6]
    $region21: #{tpu_custom_call.1} parent=1 // pred_fallthru
      _
    // Predicated region
    $region22: #{tpu_custom_call.1} parent=1 // pred_check
      _
    $region23: #{tpu_custom_call.1} parent=1 // pred_check_branch
      %140 = sbr.rel (0) target = $region25
    $region24: #{tpu_custom_call.1} parent=1 // pred_region
      %s142 = ssub.s32 128, 128
      %143 = vsyncadd [#allocation8], %s142
      %s145 = sshll.u32 [#allocation7], 4
      %s146 = int_to_ptr.vmem [resolvable:$true] %s145
      %148 = dma.vmem_to_hbm [thread:$0]  %s146, 128, %s3, [#allocation8]
    $region25: #{tpu_custom_call.1} parent=1 // pred_fallthru
      _
    // Predicated region
    $region26: #{tpu_custom_call.1} parent=1 // pred_check
      _
    $region27: #{tpu_custom_call.1} parent=1 // pred_check_branch
      %150 = sbr.rel (0) target = $region29
    $region28: #{tpu_custom_call.1} parent=1 // pred_region
      %s152 = ssub.s32 128, 128
      %153 = vsyncadd [#allocation8], %s152
      %s155 = sshll.u32 [#allocation9], 4
      %s156 = int_to_ptr.vmem [resolvable:$true] %s155
      %158 = dma.vmem_to_hbm [thread:$0]  %s156, 128, %s4, [#allocation8]
    $region29: #{tpu_custom_call.1} parent=1 // pred_fallthru
      _
    // Predicated region
    $region30: #{tpu_custom_call.1} parent=1 // pred_check
      _
    $region31: #{tpu_custom_call.1} parent=1 // pred_check_branch
      %160 = sbr.rel (0) target = $region33
    $region32: #{tpu_custom_call.1} parent=1 // pred_region
      %161 = dma.done [#allocation6], 128
    $region33: #{tpu_custom_call.1} parent=1 // pred_fallthru
      _
    // Predicated region
    $region34: #{tpu_custom_call.1} parent=1 // pred_check
      _
    $region35: #{tpu_custom_call.1} parent=1 // pred_check_branch
      %163 = sbr.rel (0) target = $region37
    $region36: #{tpu_custom_call.1} parent=1 // pred_region
      %164 = dma.done [#allocation8], 128
    $region37: #{tpu_custom_call.1} parent=1 // pred_fallthru
      _
    // Predicated region
    $region38: #{tpu_custom_call.1} parent=1 // pred_check
      _
    $region39: #{tpu_custom_call.1} parent=1 // pred_check_branch
      %166 = sbr.rel (0) target = $region41
    $region40: #{tpu_custom_call.1} parent=1 // pred_region
      %167 = dma.done [#allocation8], 128
    $region41: #{tpu_custom_call.1} parent=1 // pred_fallthru
      _
    %168 = vsyncpa [#allocation6], 1
    %169 = vsyncpa [#allocation8], 1

</llo_original>
